<compile_context>
chip_gen: v7x
topology: tpu7x:2x2x1
jax: 0.10.0
libtpu: 0.0.40
codegen_flags: <defaults>
</compile_context>

<pallas_src>
import functools

import jax
import jax.numpy as jnp
from jax.experimental import pallas as pl
from jax.experimental.pallas import tpu as pltpu


def _round_up(x, m):
    return ((x + m - 1) // m) * m


def _lr_kernel(x_ref, w_ref, b_ref, y_ref, out_ref, acc_ref, *,
               smoothing, n_rows, n_classes):
    i = pl.program_id(0)

    @pl.when(i == 0)
    def _():
        acc_ref[...] = jnp.zeros_like(acc_ref)

    x = x_ref[...]                                   # [TB, D]   (f32 or bf16)
    w = w_ref[...]                                   # [D, Cp]   (same dtype as x)
    b = b_ref[...]                                   # [1, Cp]   f32 (pad lanes = -1e30)
    y = y_ref[...]                                   # [TB, 1]   int32

    # --- fc: logits = x @ W + b  (MXU, f32 accumulate; elementwise stays f32) ---
    logits = jnp.dot(x, w, preferred_element_type=jnp.float32) + b   # [TB, Cp]
    TB, Cp = logits.shape

    cls_idx = jax.lax.broadcasted_iota(jnp.int32, (TB, Cp), 1)
    real_cls = cls_idx < n_classes                   # mask off padded class lanes

    # --- log_softmax along classes; padded lanes (-1e30) never win the max
    #     and exp() underflows to exactly 0 for them. `m` is reused for argmax. ---
    m = jnp.max(logits, axis=-1, keepdims=True)                      # [TB, 1]
    z = logits - m
    lse = jnp.log(jnp.sum(jnp.exp(z), axis=-1, keepdims=True))
    logp = z - lse                                                    # [TB, Cp]

    # --- label-smoothed cross entropy without materializing true_dist ---
    onehot = cls_idx == y                                             # [TB, Cp]
    picked = jnp.sum(jnp.where(onehot, logp, 0.0),
                     axis=-1, keepdims=True)                          # [TB, 1] = logp[y]
    if smoothing == 0.0:                    # static branch -> folds at trace time
        per_example = -picked
    else:
        off = smoothing / (n_classes - 1)
        total = jnp.sum(jnp.where(real_cls, logp, 0.0),
                        axis=-1, keepdims=True)                       # sum over real classes
        per_example = -((1.0 - smoothing - off) * picked + off * total)

    # --- argmax decision (first index on ties, exact-equality vs m is intended
    #     and matches torch.argmax first-occurrence semantics) ---
    decision = jnp.min(jnp.where(logits == m, cls_idx, Cp),
                       axis=-1, keepdims=True)                        # [TB, 1]
    correct = (decision == y).astype(jnp.float32)                     # [TB, 1]

    # --- mask padded batch rows, fuse the two batch reductions ---
    row_idx = i * TB + jax.lax.broadcasted_iota(jnp.int32, (TB, 1), 0)
    valid = (row_idx < n_rows).astype(jnp.float32)                    # [TB, 1]
    lane2 = jax.lax.broadcasted_iota(jnp.int32, (TB, 2), 1)
    stacked = jnp.where(lane2 == 0, per_example * valid, correct * valid)  # [TB, 2]
    acc_ref[...] += jnp.sum(stacked, axis=0, keepdims=True)           # (1, 2)

    @pl.when(i == pl.num_programs(0) - 1)
    def _():
        # Single vector store: [loss, score].
        out_ref[...] = acc_ref[...] * (1.0 / n_rows)


@functools.partial(jax.jit, static_argnames=("smoothing",))
def lr_forward(x, w_t, bias, y, smoothing=0.0):
    """x: [B, D] features, w_t: [D, C] (fc.weight.T), bias: [C], y: [B] int.
    smoothing is a static Python float. Returns (loss, score) scalars."""
    B, D = x.shape
    C = w_t.shape[1]

    # Pass x / w_t dtypes through (bf16 stays bf16 -> half the HBM traffic);
    # keep them consistent so the MXU sees matching operand dtypes.
    if w_t.dtype != x.dtype:
        w_t = w_t.astype(x.dtype)
    itemsize = jnp.dtype(x.dtype).itemsize

    # Lane-dense class padding (padded logits forced to -1e30 via bias).
    C_pad = max(128, _round_up(C, 128))
    if C_pad > C:
        w_t = jnp.pad(w_t, ((0, 0), (0, C_pad - C)))
    b2 = jnp.pad(bias.astype(jnp.float32).reshape(1, C),
                 ((0, 0), (0, C_pad - C)), constant_values=-1e30)

    # Batch tile sized so double-buffered x + resident W fit comfortably under
    # the 16 MiB v5e scoped-VMEM default (also fine on v6e / 64-MiB-VMEM v7x).
    budget = 12 * 1024 * 1024
    w_bytes = 2 * D * C_pad * itemsize                      # W is double-buffered too
    tile_budget = max(budget - w_bytes, 1 << 20)
    tile_cap = max(8, int(tile_budget // (2 * D * itemsize)))
    TILE_B = max(8, min(512, tile_cap, _round_up(B, 8)))
    TILE_B = (TILE_B // 8) * 8
    B_pad = _round_up(B, TILE_B)

    if B_pad > B:
        x = jnp.pad(x, ((0, B_pad - B), (0, 0)))
    y2 = jnp.pad(y.astype(jnp.int32), (0, B_pad - B)).reshape(B_pad, 1)

    grid = (B_pad // TILE_B,)
    cost = pl.CostEstimate(
        flops=2 * B_pad * D * C_pad,
        transcendentals=B_pad * (C_pad + 1),
        bytes_accessed=itemsize * (B_pad * D + D * C_pad) + 4 * (C_pad + B_pad) + 8,
    )

    out = pl.pallas_call(
        functools.partial(_lr_kernel, smoothing=float(smoothing),
                          n_rows=B, n_classes=C),
        out_shape=jax.ShapeDtypeStruct((1, 2), jnp.float32),
        grid_spec=pltpu.PrefetchScalarGridSpec(
            num_scalar_prefetch=0,
            grid=grid,
            in_specs=[
                pl.BlockSpec((TILE_B, D), lambda i: (i, 0)),    # x tile
                pl.BlockSpec((D, C_pad), lambda i: (0, 0)),     # W resident
                pl.BlockSpec((1, C_pad), lambda i: (0, 0)),     # bias resident
                pl.BlockSpec((TILE_B, 1), lambda i: (i, 0)),    # labels tile
            ],
            out_specs=pl.BlockSpec((1, 2), lambda i: (0, 0)),
            scratch_shapes=[pltpu.VMEM((1, 2), jnp.float32)],
        ),
        compiler_params=pltpu.CompilerParams(
            dimension_semantics=("arbitrary",)),                 # batch axis carries the reduction
        cost_estimate=cost,
    )(x, w_t, b2, y2)

    return out[0, 0], out[0, 1]


def _reference(x, w_t, bias, y, smoothing):
    logits = x.astype(jnp.float32) @ w_t.astype(jnp.float32) + bias[None, :]
    logp = jax.nn.log_softmax(logits, axis=-1)
    C = logits.shape[1]
    onehot = jax.nn.one_hot(y, C, dtype=jnp.float32)
    if smoothing == 0.0:
        true_dist = onehot
    else:
        true_dist = onehot * (1.0 - smoothing) + (1.0 - onehot) * (
            smoothing / (C - 1))
    loss = jnp.mean(jnp.sum(-true_dist * logp, axis=-1))
    decision = jnp.argmax(logits, axis=1)
    score = jnp.mean((decision == y).astype(jnp.float32))
    return loss, score


if __name__ == "__main__":
    key = jax.random.PRNGKey(0)
    B, D, C = 8, 32, 16           # batch, inputDim, numClasses

    k_x, k_w, k_b, k_y, k_wr, k_br = jax.random.split(key, 6)

    # Features (backbone output) and labels.
    x = jax.random.normal(k_x, (B, D), dtype=jnp.float32)
    y = jax.random.randint(k_y, (B,), 0, C, dtype=jnp.int32)

    # nn.Linear(inputDim, numClasses): weight [C, D], bias [C].
    bound = 1.0 / (D ** 0.5)
    fc_weight = jax.random.uniform(k_w, (C, D), jnp.float32, -bound, bound)
    fc_bias = jax.random.uniform(k_b, (C,), jnp.float32, -bound, bound)
    # nn.Linear(inputDim, 4) (fcRotations): present in the module but unused on
    # the lr-only path.
    fcrot_weight = jax.random.uniform(k_wr, (4, D), jnp.float32, -bound, bound)
    fcrot_bias = jax.random.uniform(k_br, (4,), jnp.float32, -bound, bound)
    del fcrot_weight, fcrot_bias

    # args.label_smoothing == 0  -> nn.CrossEntropyLoss path.
    loss, score = lr_forward(x, fc_weight.T, fc_bias, y, smoothing=0.0)
    jax.block_until_ready((loss, score))
    ref_loss, ref_score = _reference(x, fc_weight.T, fc_bias, y, 0.0)
    assert jnp.allclose(loss, ref_loss, atol=1e-5), (loss, ref_loss)
    assert jnp.allclose(score, ref_score, atol=1e-6), (score, ref_score)

    # args.label_smoothing != 0  -> LabelSmoothingLoss path.
    loss_s, score_s = lr_forward(x, fc_weight.T, fc_bias, y, smoothing=0.1)
    jax.block_until_ready((loss_s, score_s))
    ref_loss_s, ref_score_s = _reference(x, fc_weight.T, fc_bias, y, 0.1)
    assert jnp.allclose(loss_s, ref_loss_s, atol=1e-5), (loss_s, ref_loss_s)
    assert jnp.allclose(score_s, ref_score_s, atol=1e-6), (score_s, ref_score_s)

    print("KERNEL_OK")
</pallas_src>

<mosaic_0001>
module attributes {stable_mosaic.version = 11 : i64} {
  func.func @_lr_kernel(%arg0: i32, %arg1: memref<8x32xf32, #tpu.memory_space<vmem>>, %arg2: memref<32x128xf32, #tpu.memory_space<vmem>>, %arg3: memref<1x128xf32, #tpu.memory_space<vmem>>, %arg4: memref<8x1xi32, #tpu.memory_space<vmem>>, %arg5: memref<1x2xf32, #tpu.memory_space<vmem>>, %arg6: memref<1x2xf32, #tpu.memory_space<vmem>>) attributes {dimension_semantics = [#tpu.dimension_semantics<arbitrary>], iteration_bounds = array<i64: 1>, scalar_prefetch = 0 : i64, scratch_operands = 1 : i64, tpu.core_type = #tpu.core_type<tc>, window_params = [{transform_indices = @transform_0, window_bounds = array<i64: 8, 32>}, {pipeline_mode = #tpu.pipeline_mode<synchronous>, transform_indices = @transform_1, window_bounds = array<i64: 32, 128>}, {pipeline_mode = #tpu.pipeline_mode<synchronous>, transform_indices = @transform_2, window_bounds = array<i64: 1, 128>}, {transform_indices = @transform_3, window_bounds = array<i64: 8, 1>}, {pipeline_mode = #tpu.pipeline_mode<synchronous>, transform_indices = @transform_4, window_bounds = array<i64: 1, 2>}]} {
    %c0_i32 = arith.constant 0 : i32
    %0 = arith.cmpi eq, %arg0, %c0_i32 : i32
    %1 = arith.extui %0 : i1 to i32
    %c0_i32_0 = arith.constant 0 : i32
    %2 = arith.cmpi ne, %1, %c0_i32_0 : i32
    scf.if %2 {
      %cst_23 = arith.constant 0.000000e+00 : f32
      %64 = vector.broadcast %cst_23 : f32 to vector<1x2xf32>
      %c0_24 = arith.constant 0 : index
      %c0_25 = arith.constant 0 : index
      %65 = vector.load %arg6[%c0_24, %c0_25] : memref<1x2xf32, #tpu.memory_space<vmem>>, vector<1x2xf32>
      tpu.vector_store %arg6[%c0_24, %c0_25], %64 {strides = array<i32>} : memref<1x2xf32, #tpu.memory_space<vmem>>, vector<1x2xf32>,
    } else {
    }
    %c0 = arith.constant 0 : index
    %c0_1 = arith.constant 0 : index
    %3 = vector.load %arg1[%c0, %c0_1] : memref<8x32xf32, #tpu.memory_space<vmem>>, vector<8x32xf32>
    %c0_2 = arith.constant 0 : index
    %c0_3 = arith.constant 0 : index
    %4 = vector.load %arg2[%c0_2, %c0_3] : memref<32x128xf32, #tpu.memory_space<vmem>>, vector<32x128xf32>
    %c0_4 = arith.constant 0 : index
    %c0_5 = arith.constant 0 : index
    %5 = vector.load %arg3[%c0_4, %c0_5] : memref<1x128xf32, #tpu.memory_space<vmem>>, vector<1x128xf32>
    %c0_6 = arith.constant 0 : index
    %c0_7 = arith.constant 0 : index
    %6 = vector.load %arg4[%c0_6, %c0_7] : memref<8x1xi32, #tpu.memory_space<vmem>>, vector<8x1xi32>
    %cst = arith.constant dense<0.000000e+00> : vector<8x128xf32>
    %7 = tpu.matmul %3, %4, %cst {dimension_numbers = #tpu.dot_dimension_numbers<[1], [0], [0], [1], [0, 0, 1, 1], [], []>} : vector<8x32xf32>, vector<32x128xf32>, vector<8x128xf32> -> vector<8x128xf32>
    %8 = vector.broadcast %5 : vector<1x128xf32> to vector<8x128xf32>
    %9 = arith.addf %7, %8 : vector<8x128xf32>
    %10 = tpu.iota {dimensions = array<i32: 1>} : vector<8x128xi32>
    %cst_8 = arith.constant dense<0xFF800000> : vector<8xf32>
    %11 = vector.multi_reduction <maximumf>, %9, %cst_8 [1] : vector<8x128xf32> to vector<8xf32>
    %12 = vector.shape_cast %11 : vector<8xf32> to vector<8x1xf32>
    %13 = vector.broadcast %12 : vector<8x1xf32> to vector<8x128xf32>
    %14 = arith.subf %9, %13 : vector<8x128xf32>
    %15 = math.exp %14 : vector<8x128xf32>
    %cst_9 = arith.constant dense<0.000000e+00> : vector<8xf32>
    %16 = vector.multi_reduction <add>, %15, %cst_9 [1] : vector<8x128xf32> to vector<8xf32>
    %17 = vector.shape_cast %16 : vector<8xf32> to vector<8x1xf32>
    %18 = math.log %17 : vector<8x1xf32>
    %19 = vector.broadcast %18 : vector<8x1xf32> to vector<8x128xf32>
    %20 = arith.subf %14, %19 : vector<8x128xf32>
    %21 = vector.broadcast %6 : vector<8x1xi32> to vector<8x128xi32>
    %22 = arith.cmpi eq, %10, %21 : vector<8x128xi32>
    %cst_10 = arith.constant 0.000000e+00 : f32
    %23 = vector.broadcast %cst_10 : f32 to vector<8x128xf32>
    %24 = arith.select %22, %20, %23 : vector<8x128xi1>, vector<8x128xf32>
    %cst_11 = arith.constant dense<0.000000e+00> : vector<8xf32>
    %25 = vector.multi_reduction <add>, %24, %cst_11 [1] : vector<8x128xf32> to vector<8xf32>
    %26 = vector.shape_cast %25 : vector<8xf32> to vector<8x1xf32>
    %cst_12 = arith.constant 0.000000e+00 : f32
    %27 = vector.broadcast %cst_12 : f32 to vector<8x1xf32>
    %28 = arith.subf %27, %26 : vector<8x1xf32>
    %29 = vector.broadcast %12 : vector<8x1xf32> to vector<8x128xf32>
    %30 = arith.cmpf oeq, %9, %29 : vector<8x128xf32>
    %c128_i32 = arith.constant 128 : i32
    %31 = vector.broadcast %c128_i32 : i32 to vector<8x128xi32>
    %32 = arith.select %30, %10, %31 : vector<8x128xi1>, vector<8x128xi32>
    %cst_13 = arith.constant dense<2147483647> : vector<8xi32>
    %33 = vector.multi_reduction <minsi>, %32, %cst_13 [1] : vector<8x128xi32> to vector<8xi32>
    %34 = vector.shape_cast %33 : vector<8xi32> to vector<8x1xi32>
    %35 = arith.cmpi eq, %34, %6 : vector<8x1xi32>
    %36 = arith.extui %35 : vector<8x1xi1> to vector<8x1xi32>
    %37 = arith.sitofp %36 : vector<8x1xi32> to vector<8x1xf32>
    %c8_i32 = arith.constant 8 : i32
    %38 = arith.muli %arg0, %c8_i32 : i32
    %39 = tpu.iota {dimensions = array<i32: 0>} : vector<8x1xi32>
    %40 = vector.broadcast %38 : i32 to vector<8x1xi32>
    %41 = arith.addi %40, %39 : vector<8x1xi32>
    %c8_i32_14 = arith.constant 8 : i32
    %42 = vector.broadcast %c8_i32_14 : i32 to vector<8x1xi32>
    %43 = arith.cmpi slt, %41, %42 : vector<8x1xi32>
    %44 = arith.extui %43 : vector<8x1xi1> to vector<8x1xi32>
    %45 = arith.sitofp %44 : vector<8x1xi32> to vector<8x1xf32>
    %46 = tpu.iota {dimensions = array<i32: 1>} : vector<8x2xi32>
    %c0_i32_15 = arith.constant 0 : i32
    %47 = vector.broadcast %c0_i32_15 : i32 to vector<8x2xi32>
    %48 = arith.cmpi eq, %46, %47 : vector<8x2xi32>
    %49 = arith.mulf %28, %45 : vector<8x1xf32>
    %50 = arith.mulf %37, %45 : vector<8x1xf32>
    %51 = vector.shape_cast %49 : vector<8x1xf32> to vector<8x1xf32>
    %52 = vector.broadcast %51 : vector<8x1xf32> to vector<8x2xf32>
    %53 = vector.shape_cast %50 : vector<8x1xf32> to vector<8x1xf32>
    %54 = vector.broadcast %53 : vector<8x1xf32> to vector<8x2xf32>
    %55 = arith.select %48, %52, %54 : vector<8x2xi1>, vector<8x2xf32>
    %c0_16 = arith.constant 0 : index
    %c0_17 = arith.constant 0 : index
    %56 = vector.load %arg6[%c0_16, %c0_17] : memref<1x2xf32, #tpu.memory_space<vmem>>, vector<1x2xf32>
    %cst_18 = arith.constant dense<0.000000e+00> : vector<2xf32>
    %57 = vector.multi_reduction <add>, %55, %cst_18 [0] : vector<8x2xf32> to vector<2xf32>
    %58 = vector.shape_cast %57 : vector<2xf32> to vector<1x2xf32>
    %59 = arith.addf %56, %58 : vector<1x2xf32>
    %c0_19 = arith.constant 0 : index
    %c0_20 = arith.constant 0 : index
    %60 = vector.load %arg6[%c0_19, %c0_20] : memref<1x2xf32, #tpu.memory_space<vmem>>, vector<1x2xf32>
    tpu.vector_store %arg6[%c0_19, %c0_20], %59 {strides = array<i32>} : memref<1x2xf32, #tpu.memory_space<vmem>>, vector<1x2xf32>,
    %c0_i32_21 = arith.constant 0 : i32
    %61 = arith.cmpi eq, %arg0, %c0_i32_21 : i32
    %62 = arith.extui %61 : i1 to i32
    %c0_i32_22 = arith.constant 0 : i32
    %63 = arith.cmpi ne, %62, %c0_i32_22 : i32
    scf.if %63 {
      %c0_23 = arith.constant 0 : index
      %c0_24 = arith.constant 0 : index
      %64 = vector.load %arg6[%c0_23, %c0_24] : memref<1x2xf32, #tpu.memory_space<vmem>>, vector<1x2xf32>
      %cst_25 = arith.constant 1.250000e-01 : f32
      %65 = vector.broadcast %cst_25 : f32 to vector<1x2xf32>
      %66 = arith.mulf %64, %65 : vector<1x2xf32>
      %c0_26 = arith.constant 0 : index
      %c0_27 = arith.constant 0 : index
      %67 = vector.load %arg5[%c0_26, %c0_27] : memref<1x2xf32, #tpu.memory_space<vmem>>, vector<1x2xf32>
      tpu.vector_store %arg5[%c0_26, %c0_27], %66 {strides = array<i32>} : memref<1x2xf32, #tpu.memory_space<vmem>>, vector<1x2xf32>,
    } else {
    }
    return
  }
  func.func @transform_0(%arg0: i32) -> (i32, i32) {
    %c0_i32 = arith.constant 0 : i32
    %c0_i32_0 = arith.constant 0 : i32
    return %arg0, %c0_i32 : i32, i32
  }
  func.func @transform_1(%arg0: i32) -> (i32, i32) {
    %c0_i32 = arith.constant 0 : i32
    %c0_i32_0 = arith.constant 0 : i32
    %c0_i32_1 = arith.constant 0 : i32
    return %c0_i32, %c0_i32_0 : i32, i32
  }
  func.func @transform_2(%arg0: i32) -> (i32, i32) {
    %c0_i32 = arith.constant 0 : i32
    %c0_i32_0 = arith.constant 0 : i32
    %c0_i32_1 = arith.constant 0 : i32
    return %c0_i32, %c0_i32_0 : i32, i32
  }
  func.func @transform_3(%arg0: i32) -> (i32, i32) {
    %c0_i32 = arith.constant 0 : i32
    %c0_i32_0 = arith.constant 0 : i32
    return %arg0, %c0_i32 : i32, i32
  }
  func.func @transform_4(%arg0: i32) -> (i32, i32) {
    %c0_i32 = arith.constant 0 : i32
    %c0_i32_0 = arith.constant 0 : i32
    %c0_i32_1 = arith.constant 0 : i32
    return %c0_i32, %c0_i32_0 : i32, i32
  }
}

</mosaic_0001>

<llo_original>
// kernel: lr_forward.1
$region0: #{lr_forward.1}
  #allocation0 [shape = 'u32[]', space=smem, size = 0x4, offset = 0x4, fixed_abs, tag = 'smem constant byte address 0x4 - core index']
  #allocation1 [shape = 'u32[144,128]{1,0:T(1,128)}', space=vmem, size = 0x12000, scoped, tag = 'internal scratch']
  #allocation2 [shape = 'f32[1,2]{1,0:T(1,128)}', space=vmem, size = 0x200, scoped, tag = 'scratch operand']
  %s0 = inlined_call_operand.vmem [shape: f32[8,32], index: 0, kind: input, shape index: {}]
  %s1 = inlined_call_operand.vmem [shape: f32[32,128], index: 1, kind: input, shape index: {}]
  %s2 = inlined_call_operand.vmem [shape: f32[1,128], index: 2, kind: input, shape index: {}]
  %s3 = inlined_call_operand.vmem [shape: s32[8,1], index: 3, kind: input, shape index: {}]
  %s4 = inlined_call_operand.vmem [shape: f32[1,2], index: 4, kind: output, shape index: {}]
  %s5 = sld [smem:[#allocation0]]
  $region34: #{lr_forward.1} parent=0
    _
  %s7 = ssub.s32 1, %s5
  %s8 = scalar_select 0, %s7, %s5
  // Predicated region
  $region2: #{lr_forward.1} parent=0 // pred_check
    _
  $region3: #{lr_forward.1} parent=0 // pred_check_branch
    %10 = sbr.rel (0) target = $region5
  $region4: #{lr_forward.1} parent=0 // pred_region
    _
  $region5: #{lr_forward.1} parent=0 // pred_fallthru
    _
  // Predicated region
  $region6: #{lr_forward.1} parent=0 // pred_check
    _
  $region7: #{lr_forward.1} parent=0 // pred_check_branch
    %12 = sbr.rel (0) target = $region9
  $region8: #{lr_forward.1} parent=0 // pred_region
    _
  $region9: #{lr_forward.1} parent=0 // pred_fallthru
    _
  // Predicated region
  $region10: #{lr_forward.1} parent=0 // pred_check
    _
  $region11: #{lr_forward.1} parent=0 // pred_check_branch
    %14 = sbr.rel (0) target = $region13
  $region12: #{lr_forward.1} parent=0 // pred_region
    _
  $region13: #{lr_forward.1} parent=0 // pred_fallthru
    _
  // Predicated region
  $region14: #{lr_forward.1} parent=0 // pred_check
    _
  $region15: #{lr_forward.1} parent=0 // pred_check_branch
    %16 = sbr.rel (0) target = $region17
  $region16: #{lr_forward.1} parent=0 // pred_region
    _
  $region17: #{lr_forward.1} parent=0 // pred_fallthru
    _
  %p17 = scmp.eq.s32.totalorder 0, 0
  // Predicated region
  $region18: #{lr_forward.1} parent=0 // pred_check
    %p18 = pneg %p17
  $region19: #{lr_forward.1} parent=0 // pred_check_branch
    %20 = sbr.rel (%p18) target = $region21
  $region20: #{lr_forward.1} parent=0 // pred_region
    %vm21 = vcmask 8192
    %22 = vst.msk [vmem:[#allocation2] sm:$0x1] %vm21, 0.0
  $region21: #{lr_forward.1} parent=0 // pred_fallthru
    _
  %v23 = vld [vmem:[%s0] sm:$0xff]
  %v24 = vld [vmem:[%s1] sm:$0xff]
  %v25 = vld [vmem:[%s1 + $0x8] sm:$0xff]
  %v26 = vld [vmem:[%s1 + $0x10] sm:$0xff]
  %v27 = vld [vmem:[%s1 + $0x18] sm:$0xff]
  %v28 = vld [vmem:[%s2] sm:$0x1]
  %v29 = vld [vmem:[%s3] sm:$0xff]
  %v31 = vlaneseq
  %v32 = vshrl.u32 %v31, 7
  %v33 = vsub.s32 0, %v32
  %v34 = vrot.slane %v28, %v33
  %vm36 = vcmask 261120
  %v38 = vsel %vm36, %v23, 0
  %40 = vmatprep.subr.mxu0 0.0
  %41 = vmatpush1.msra.mxu0 %v24
  %42 = vmatprep.subr.mxu0 0.0
  %43 = vmatpush1.msra.mxu0 %v25
  %44 = vmatprep.subr.mxu0 0.0
  %45 = vmatpush1.msra.mxu0 %v26
  %46 = vmatprep.subr.mxu0 0.0
  %47 = vmatpush1.msra.mxu0 %v27
  %48 = vmatprep.subr.mxu0 0.0
  %49 = vmatpush1.msra.mxu0 0.0
  %50 = vmatprep.subr.mxu0 0.0
  %51 = vmatpush1.msra.mxu0 0.0
  %52 = vmatprep.subr.mxu0 0.0
  %53 = vmatpush1.msra.mxu0 0.0
  %54 = vmatprep.subr.mxu0 0.0
  %55 = vmatpush1.msra.mxu0 0.0
  %56 = vmatprep.subr.mxu0 0.0
  %57 = vmatpush1.msra.mxu0 0.0
  %58 = vmatprep.subr.mxu0 0.0
  %59 = vmatpush1.msra.mxu0 0.0
  %60 = vmatprep.subr.mxu0 0.0
  %61 = vmatpush1.msra.mxu0 0.0
  %62 = vmatprep.subr.mxu0 0.0
  %63 = vmatpush1.msra.mxu0 0.0
  %64 = vmatprep.subr.mxu0 0.0
  %65 = vmatpush1.msra.mxu0 0.0
  %66 = vmatprep.subr.mxu0 0.0
  %67 = vmatpush1.msra.mxu0 0.0
  %68 = vmatprep.subr.mxu0 0.0
  %69 = vmatpush1.msra.mxu0 0.0
  %70 = vmatprep.subr.mxu0 0.0
  %71 = vmatpush1.msra.mxu0 0.0
  %72 = vmatprep.subr.mxu0 0.0
  %73 = vmatpush1.msra.mxu0 0.0
  %74 = vmatprep.subr.mxu0 0.0
  %75 = vmatpush1.msra.mxu0 0.0
  %76 = vmatprep.subr.mxu0 0.0
  %77 = vmatpush1.msra.mxu0 0.0
  %78 = vmatprep.subr.mxu0 0.0
  %79 = vmatpush1.msra.mxu0 0.0
  %80 = vmatprep.subr.mxu0 0.0
  %81 = vmatpush1.msra.mxu0 0.0
  %82 = vmatprep.subr.mxu0 0.0
  %83 = vmatpush1.msra.mxu0 0.0
  %84 = vmatprep.subr.mxu0 0.0
  %85 = vmatpush1.msra.mxu0 0.0
  %86 = vmatprep.subr.mxu0 0.0
  %87 = vmatpush1.msra.mxu0 0.0
  %88 = vmatprep.subr.mxu0 0.0
  %89 = vmatpush1.msra.mxu0 0.0
  %90 = vmatprep.subr.mxu0 0.0
  %91 = vmatpush1.msra.mxu0 0.0
  %92 = vmatprep.subr.mxu0 0.0
  %93 = vmatpush1.msra.mxu0 0.0
  %94 = vmatprep.subr.mxu0 0.0
  %95 = vmatpush1.msra.mxu0 0.0
  %96 = vmatprep.subr.mxu0 0.0
  %97 = vmatpush1.msra.mxu0 0.0
  %98 = vmatprep.subr.mxu0 0.0
  %99 = vmatpush1.msra.mxu0 0.0
  %100 = vmatprep.subr.mxu0 0.0
  %101 = vmatpush1.msra.mxu0 0.0
  %102 = vmatprep.subr.mxu0 0.0
  %103 = vmatpush1.msra.mxu0 0.0
  %104 = vmatprep.mubr.f32.mxu0 0.0
  %105 = vmatmul.mubr.f32.gmra.mrb[0].mxu0 %v38
  %v106 = vpop.f32.mrb[0].mxu0
  %v107 = vadd.f32 %v34, %v106
  %v108 = vpop.f32.mrb[0].mxu0
  %109 = vdwg.mxu0
  %v110 = vlaneseq
  %v111 = vand.u32 %v110, 127
  %112 = vmax.xlane.f32.xlu0 %v107
  %v113 = vpop.xlane.xlu0 %112
  %v114 = vsub.f32 %v107, %v113
  %v115 = vmul.f32 %v114, 1.442695
  %v116 = vpow.pop %v115
  %117 = vadd.xlane.f32.xlu0 %v116
  %v118 = vpop.xlane.xlu0 %117
  %v119 = vlog2.pop %v118
  %v120 = vmul.f32 %v119, 0.6931472
  %v121 = vsub.f32 %v114, %v120
  %122 = vset.pattern.permute.xlu0 0
  %123 = vperm.xlu0 %122, %v29
  %v124 = vpop.permute.xlu0 %123
  %vm125 = vcmp.eq.s32.totalorder %v111, %v124
  %v126 = vsel %vm125, %v121, 0.0
  %127 = vadd.xlane.f32.xlu0 %v126
  %v128 = vpop.xlane.xlu0 %127
  %v129 = vsub.f32 0.0, %v128
  %vm130 = vcmp.eq.f32.partialorder %v107, %v113
  %v131 = vsel %vm130, %v111, 128
  %v132 = vand.u32 %v131, 65535
  %v133 = vshra.s32 %v131, 16
  %v134 = vcvt.s32.f32 %v132
  %v135 = vcvt.s32.f32 %v133
  %136 = vmin.xlane.f32.xlu0 %v135
  %v137 = vpop.xlane.xlu0 %136
  %vm138 = vcmp.eq.f32.partialorder %v135, %v137
  %v139 = vsel %vm138, %v134, inf
  %140 = vmin.xlane.f32.xlu0 %v139
  %v141 = vpop.xlane.xlu0 %140
  %v142 = vcvt.f32.s32 %v141
  %v143 = vcvt.f32.s32 %v137
  %v144 = vshll.u32 %v143, 16
  %v145 = vadd.s32 %v144, %v142
  %vm146 = vcmp.eq.s32.totalorder %v145, %v29
  %v147 = vsel %vm146, 1, 0
  %v148 = vcvt.s32.f32 %v147
  %s149 = smul.u32 0, 8
  %v150 = vlaneseq
  %v151 = vshrl.u32 %v150, 7
  %v152 = vstv %s149
  %v153 = vadd.s32 %v152, %v151
  %vm154 = vcmp.lt.s32.totalorder %v153, 8
  %v155 = vsel %vm154, 1, 0
  %v156 = vcvt.s32.f32 %v155
  %vm157 = vcmp.eq.s32.totalorder %v111, 0
  %v158 = vmul.f32 %v129, %v156
  %v159 = vmul.f32 %v148, %v156
  %161 = vset.pattern.permute.xlu0 0
  %162 = vperm.xlu0 %161, %v159
  %v163 = vpop.permute.xlu0 %162
  %v165 = vsel %vm157, %v158, %v163
  %v166 = vld [vmem:[#allocation2] sm:$0x1]
  %vm167 = vcmask 15360
  %v168 = vsel %vm167, %v165, 0.0
  %v169 = vrot.slane %v168, 4
  %v170 = vadd.f32 %v168, %v169
  %v171 = vrot.slane %v170, 2
  %v172 = vadd.f32 %v170, %v171
  %v173 = vrot.slane %v172, 1
  %v174 = vadd.f32 %v172, %v173
  %v175 = vadd.f32 %v166, %v174
  %vm176 = vcmask 8192
  %177 = vst.msk [vmem:[#allocation2] sm:$0x1] %vm176, %v175
  // Predicated region
  $region22: #{lr_forward.1} parent=0 // pred_check
    %p178 = pneg %p17
  $region23: #{lr_forward.1} parent=0 // pred_check_branch
    %180 = sbr.rel (%p178) target = $region25
  $region24: #{lr_forward.1} parent=0 // pred_region
    %v181 = vld [vmem:[#allocation2] sm:$0x1]
    %v182 = vmul.f32 %v181, 0.125
    %183 = vst.msk [vmem:[%s4] sm:$0x1] %vm176, %v182
  $region25: #{lr_forward.1} parent=0 // pred_fallthru
    _
  // Predicated region
  $region26: #{lr_forward.1} parent=0 // pred_check
    _
  $region27: #{lr_forward.1} parent=0 // pred_check_branch
    %185 = sbr.rel (0) target = $region29
  $region28: #{lr_forward.1} parent=0 // pred_region
    _
  $region29: #{lr_forward.1} parent=0 // pred_fallthru
    _
  // Predicated region
  $region30: #{lr_forward.1} parent=0 // pred_check
    _
  $region31: #{lr_forward.1} parent=0 // pred_check_branch
    %187 = sbr.rel (0) target = $region33
  $region32: #{lr_forward.1} parent=0 // pred_region
    _
  $region33: #{lr_forward.1} parent=0 // pred_fallthru
    _

</llo_original>
